<compile_context>
chip_gen: v6e
topology: v6e:2x2x1
jax: 0.10.0
libtpu: 0.0.40
codegen_flags: <defaults>
</compile_context>

<pallas_src>
import functools

import jax
import jax.numpy as jnp
from jax import lax
from jax.experimental import pallas as pl
from jax.experimental.pallas import tpu as pltpu

LANE = 128            # vreg lane width
SUBLANE = 8           # vreg sublane count
MAX_BATCH_TILE = 256  # fills the 256-wide MXU on v6e/v7x (2 passes on v5e)
MAX_UNROLL_TRIPS = 256


def _round_up(x, m):
    return (x + m - 1) // m * m


def _vmem_capacity_bytes():
    try:
        return int(pltpu.get_tpu_info().vmem_capacity_bytes)
    except Exception:
        return 64 * 1024 * 1024  # conservative default (v7x per-TC VMEM)


def _mlp_head(mean_emb, w1_ref, b1_ref, w2_ref, b2_ref, out_ref):
    """relu(mean @ W1 + b1) @ W2 + b2, f32 accumulation on the MXU."""
    h = jnp.dot(mean_emb, w1_ref[...], preferred_element_type=jnp.float32)
    h = jnp.maximum(h + b1_ref[...], 0.0)
    out_ref[...] = (
        jnp.dot(h, w2_ref[...], preferred_element_type=jnp.float32) + b2_ref[...]
    )


# ---------------------------------------------------------------------------
# Path A: embedding table resident in VMEM (small tables) -- no DMA machinery.
# ---------------------------------------------------------------------------
def glove_kernel_resident(ids_ref, emb_ref, w1_ref, b1_ref, w2_ref, b2_ref,
                          out_ref, acc_ref, *, seq_len, seq_pad, batch_tile):
    """One batch tile (TB rows) per grid step.

    ids_ref : (B_pad * Sp,) int32 SMEM (scalar prefetch, flattened)
    emb_ref : (V_pad, E_pad) f32 VMEM, constant index_map, single-buffered
    w1_ref  : (E_pad, H_pad), b1_ref: (1, H_pad)
    w2_ref  : (H_pad, C_pad), b2_ref: (1, C_pad)
    out_ref : (TB, C_pad)
    acc_ref : (TB, E_pad) f32 scratch -- per-row mean embedding
    """
    i = pl.program_id(0)
    S, Sp, TB = seq_len, seq_pad, batch_tile
    base = i * TB * Sp
    e_pad = emb_ref.shape[1]
    inv_s = 1.0 / S

    def per_row(b, carry):
        def per_tok(s, acc):
            tok = ids_ref[base + b * Sp + s]
            # Dynamic first-axis VMEM load of one embedding row: (1, E_pad).
            return acc + emb_ref[pl.ds(tok, 1), :]

        acc = lax.fori_loop(0, S, per_tok,
                            jnp.zeros((1, e_pad), jnp.float32),
                            unroll=(S <= 16))
        acc_ref[pl.ds(b, 1), :] = acc * inv_s
        return carry

    lax.fori_loop(0, TB, per_row, 0)

    _mlp_head(acc_ref[...], w1_ref, b1_ref, w2_ref, b2_ref, out_ref)


# ---------------------------------------------------------------------------
# Path B: embedding table in HBM (large tables) -- start-all / wait-all gather.
# ---------------------------------------------------------------------------
def glove_kernel_gather(ids_ref, emb_hbm, w1_ref, b1_ref, w2_ref, b2_ref,
                        out_ref, gbuf, sem, *, seq_len, seq_pad, batch_tile):
    """gbuf: (TB*Sp, E_pad) f32 VMEM, one disjoint destination row per gather.
    sem : (1,) DMA semaphore; every gather is identical-size, and each wait is
          rebuilt with the matching src/dst slices of its start."""
    i = pl.program_id(0)
    S, Sp, TB = seq_len, seq_pad, batch_tile
    n = TB * Sp
    base = i * TB * Sp
    e_pad = gbuf.shape[1]
    unroll = n <= MAX_UNROLL_TRIPS

    def row_copy(j):
        tok = ids_ref[base + j]
        return pltpu.make_async_copy(
            emb_hbm.at[pl.ds(tok, 1), :],
            gbuf.at[pl.ds(j, 1), :],
            sem.at[0],
        )

    # Destinations are disjoint rows, so every gather can be in flight at once:
    # issue all descriptors first (overlapping every HBM latency), then drain.
    # TODO(synk): skip gathers for padded batch rows / dedupe repeated tokens.
    def start_all(j, c):
        row_copy(j).start()
        return c

    lax.fori_loop(0, n, start_all, 0, unroll=unroll)

    def wait_all(j, c):
        row_copy(j).wait()
        return c

    lax.fori_loop(0, n, wait_all, 0, unroll=unroll)

    # Sp is a sublane multiple and padded positions point at the all-zero row,
    # so this reshape is (8,128)-tile aligned and sum over Sp == sum over S.
    gathered = gbuf[...].reshape(TB, Sp, e_pad)
    mean_emb = jnp.sum(gathered, axis=1) * (1.0 / S)
    # TODO(synk): for very long sequences, accumulate the mean chunk-wise so the
    # gather buffer does not scale with TB * Sp (keeps v7x's 64 MiB/TC happy).

    _mlp_head(mean_emb, w1_ref, b1_ref, w2_ref, b2_ref, out_ref)


# ---------------------------------------------------------------------------
# Wrapper
# ---------------------------------------------------------------------------
def _choose_batch_tile(batch_pad8, max_tile):
    tb = max(SUBLANE, _round_up(min(max_tile, batch_pad8), SUBLANE))
    # Keep >= 2 grid steps when possible so the second TensorCore (v7x megacore)
    # has work under dimension_semantics=("parallel",).
    if batch_pad8 > SUBLANE and batch_pad8 // tb < 2:
        tb = max(SUBLANE, _round_up(batch_pad8 // 2, SUBLANE))
    return tb


def glove_forward(ids, emb, w1, b1, w2, b2, *, force_hbm_gather=False):
    """ids: (B, S) int; emb: (V, E); w1: (E, H); b1: (H,); w2: (H, C); b2: (C,)."""
    B, S = ids.shape
    V, E = emb.shape
    H = w1.shape[1]
    C = w2.shape[1]

    vmem_cap = _vmem_capacity_bytes()

    E_pad = _round_up(E, LANE)
    H_pad = _round_up(H, LANE)
    C_pad = _round_up(C, LANE)
    Sp = _round_up(S, SUBLANE)
    V_pad = _round_up(V + 1, SUBLANE)   # +1: all-zero row used by padded ids

    table_bytes = V_pad * E_pad * 4
    resident_threshold = min(vmem_cap // 4, 32 * 1024 * 1024)
    use_resident = (not force_hbm_gather) and table_bytes <= resident_threshold

    B8 = _round_up(max(B, 1), SUBLANE)
    TB = _choose_batch_tile(B8, MAX_BATCH_TILE)
    if not use_resident:
        # Cap the tile so the gather buffer (TB*Sp*E_pad f32) stays inside VMEM.
        gbuf_budget = max(vmem_cap // 4, 8 * 1024 * 1024)
        tb_cap = max(SUBLANE, (gbuf_budget // (Sp * E_pad * 4)) // SUBLANE * SUBLANE)
        TB = min(TB, tb_cap)
    B_pad = _round_up(B8, TB)
    grid = (B_pad // TB,)

    # --- padded operands (zero padding is inert through gather/mean/matmul) ---
    # Token ids flattened to 1-D int32 for SMEM (2-D SMEM pads minor dim to 128).
    # Padded batch rows / sequence positions point at the all-zero row V.
    ids_p = jnp.full((B_pad, Sp), V, dtype=jnp.int32)
    ids_p = ids_p.at[:B, :S].set(ids.astype(jnp.int32))
    ids_flat = ids_p.reshape(-1)

    emb_p = jnp.zeros((V_pad, E_pad), jnp.float32).at[:V, :E].set(
        emb.astype(jnp.float32))
    w1_p = jnp.zeros((E_pad, H_pad), jnp.float32).at[:E, :H].set(w1)
    b1_p = jnp.zeros((1, H_pad), jnp.float32).at[0, :H].set(b1.reshape(-1))
    w2_p = jnp.zeros((H_pad, C_pad), jnp.float32).at[:H, :C].set(w2)
    b2_p = jnp.zeros((1, C_pad), jnp.float32).at[0, :C].set(b2.reshape(-1))

    # Constant (grid-invariant) blocks: single-buffered to halve their VMEM.
    def resident(shape):
        return pl.BlockSpec(shape, lambda i, ids_ref: (0,) * len(shape),
                            pipeline_mode=pl.Buffered(1))

    weight_specs = [
        resident((E_pad, H_pad)),   # w1
        resident((1, H_pad)),       # b1
        resident((H_pad, C_pad)),   # w2
        resident((1, C_pad)),       # b2
    ]
    out_spec = pl.BlockSpec((TB, C_pad), lambda i, ids_ref: (i, 0))

    if use_resident:
        kernel = functools.partial(glove_kernel_resident,
                                   seq_len=S, seq_pad=Sp, batch_tile=TB)
        in_specs = [resident((V_pad, E_pad))] + weight_specs
        scratch_shapes = [pltpu.VMEM((TB, E_pad), jnp.float32)]
        gathered_bytes = table_bytes
    else:
        kernel = functools.partial(glove_kernel_gather,
                                   seq_len=S, seq_pad=Sp, batch_tile=TB)
        in_specs = [pl.BlockSpec(memory_space=pl.ANY)] + weight_specs
        scratch_shapes = [pltpu.VMEM((TB * Sp, E_pad), jnp.float32),
                          pltpu.SemaphoreType.DMA((1,))]
        gathered_bytes = B_pad * Sp * E_pad * 4

    flops = (2 * B_pad * E_pad * H_pad
             + 2 * B_pad * H_pad * C_pad
             + B_pad * S * E_pad)                      # mean-reduce adds
    bytes_accessed = (gathered_bytes
                      + (E_pad * H_pad + H_pad * C_pad + H_pad + C_pad) * 4
                      + B_pad * Sp * 4                 # token ids
                      + B_pad * C_pad * 4)             # output

    vmem_limit = min(int(vmem_cap * 0.75), 100 * 1024 * 1024)

    out = pl.pallas_call(
        kernel,
        out_shape=jax.ShapeDtypeStruct((B_pad, C_pad), jnp.float32),
        grid_spec=pltpu.PrefetchScalarGridSpec(
            num_scalar_prefetch=1,                     # token ids -> SMEM
            grid=grid,
            in_specs=in_specs,
            out_specs=out_spec,
            scratch_shapes=scratch_shapes,
        ),
        compiler_params=pltpu.CompilerParams(
            dimension_semantics=("parallel",),         # batch tiles across TCs
            vmem_limit_bytes=vmem_limit,               # generation-aware limit
        ),
        cost_estimate=pl.CostEstimate(
            flops=flops, transcendentals=0, bytes_accessed=bytes_accessed),
    )(ids_flat, emb_p, w1_p, b1_p, w2_p, b2_p)

    return out[:B, :C]


def reference_forward(ids, emb, w1, b1, w2, b2):
    e = jnp.take(emb, ids, axis=0)            # (B, S, E)
    m = e.mean(axis=1)                        # (B, E)
    h = jnp.maximum(m @ w1 + b1, 0.0)         # (B, H)
    return h @ w2 + b2                        # (B, C)


if __name__ == "__main__":
    # Small synthetic shapes consistent with the module's forward.
    B, S = 16, 8          # batch, sequence length
    V, E = 64, 32         # vocab size, embedding dim
    H, C = 32, 5          # hidden dim, num_classes

    key = jax.random.PRNGKey(0)
    k_ids, k_emb, k_w1, k_b1, k_w2, k_b2 = jax.random.split(key, 6)

    ids = jax.random.randint(k_ids, (B, S), 0, V, dtype=jnp.int32)
    emb = jax.random.normal(k_emb, (V, E), dtype=jnp.float32) * 0.1
    # PyTorch nn.Linear stores weight as (out, in); we pass the (in, out) transpose.
    w1 = jax.random.normal(k_w1, (E, H), dtype=jnp.float32) * 0.1
    b1 = jax.random.normal(k_b1, (H,), dtype=jnp.float32) * 0.1
    w2 = jax.random.normal(k_w2, (H, C), dtype=jnp.float32) * 0.1
    b2 = jax.random.normal(k_b2, (C,), dtype=jnp.float32) * 0.1

    ref = reference_forward(ids, emb, w1, b1, w2, b2)

    # Path A: table is tiny -> auto-selected VMEM-resident path.
    out_res = jax.block_until_ready(glove_forward(ids, emb, w1, b1, w2, b2))
    assert out_res.shape == (B, C)
    assert jnp.allclose(out_res, ref, atol=1e-4, rtol=1e-4), "resident path mismatch"

    # Path B: HBM-gather path (forced here; auto-selected for large tables).
    out_hbm = jax.block_until_ready(
        glove_forward(ids, emb, w1, b1, w2, b2, force_hbm_gather=True))
    assert jnp.allclose(out_hbm, ref, atol=1e-4, rtol=1e-4), "gather path mismatch"

    print("KERNEL_OK")
</pallas_src>

<mosaic_0001>
module attributes {stable_mosaic.version = 11 : i64} {
  func.func @glove_kernel_resident(%arg0: i32, %arg1: memref<128xi32, #tpu.memory_space<smem>>, %arg2: memref<72x128xf32, #tpu.memory_space<vmem>>, %arg3: memref<128x128xf32, #tpu.memory_space<vmem>>, %arg4: memref<1x128xf32, #tpu.memory_space<vmem>>, %arg5: memref<128x128xf32, #tpu.memory_space<vmem>>, %arg6: memref<1x128xf32, #tpu.memory_space<vmem>>, %arg7: memref<8x128xf32, #tpu.memory_space<vmem>>, %arg8: memref<8x128xf32, #tpu.memory_space<vmem>>) attributes {dimension_semantics = [#tpu.dimension_semantics<parallel>], iteration_bounds = array<i64: 2>, scalar_prefetch = 1 : i64, scratch_operands = 1 : i64, tpu.core_type = #tpu.core_type<tc>, window_params = [{pipeline_mode = #tpu.pipeline_mode<synchronous>, transform_indices = @transform_0, window_bounds = array<i64: 72, 128>}, {pipeline_mode = #tpu.pipeline_mode<synchronous>, transform_indices = @transform_1, window_bounds = array<i64: 128, 128>}, {pipeline_mode = #tpu.pipeline_mode<synchronous>, transform_indices = @transform_2, window_bounds = array<i64: 1, 128>}, {pipeline_mode = #tpu.pipeline_mode<synchronous>, transform_indices = @transform_3, window_bounds = array<i64: 128, 128>}, {pipeline_mode = #tpu.pipeline_mode<synchronous>, transform_indices = @transform_4, window_bounds = array<i64: 1, 128>}, {transform_indices = @transform_5, window_bounds = array<i64: 8, 128>}]} {
    %c8_i32 = arith.constant 8 : i32
    %0 = arith.muli %arg0, %c8_i32 : i32
    %c8_i32_0 = arith.constant 8 : i32
    %1 = arith.muli %0, %c8_i32_0 : i32
    %c0_i32 = arith.constant 0 : i32
    %c8_i32_1 = arith.constant 8 : i32
    %2 = arith.addi %c0_i32, %c8_i32_1 : i32
    %c1_i32 = arith.constant 1 : i32
    scf.for %arg9 = %c0_i32 to %2 step %c1_i32  : i32 {
      %cst_16 = arith.constant 0.000000e+00 : f32
      %17 = vector.broadcast %cst_16 : f32 to vector<1x128xf32>
      %c0_i32_17 = arith.constant 0 : i32
      %c8_i32_18 = arith.constant 8 : i32
      %18 = arith.muli %arg9, %c8_i32_18 : i32
      %19 = arith.addi %1, %18 : i32
      %20 = arith.addi %19, %c0_i32_17 : i32
      %21 = arith.index_cast %20 : i32 to index
      %22 = memref.load %arg1[%21] : memref<128xi32, #tpu.memory_space<smem>>
      %23 = arith.index_cast %22 : i32 to index
      %c0_19 = arith.constant 0 : index
      %24 = vector.load %arg2[%23, %c0_19] : memref<72x128xf32, #tpu.memory_space<vmem>>, vector<1x128xf32>
      %25 = arith.addf %17, %24 : vector<1x128xf32>
      %c1_i32_20 = arith.constant 1 : i32
      %c8_i32_21 = arith.constant 8 : i32
      %26 = arith.muli %arg9, %c8_i32_21 : i32
      %27 = arith.addi %1, %26 : i32
      %28 = arith.addi %27, %c1_i32_20 : i32
      %29 = arith.index_cast %28 : i32 to index
      %30 = memref.load %arg1[%29] : memref<128xi32, #tpu.memory_space<smem>>
      %31 = arith.index_cast %30 : i32 to index
      %c0_22 = arith.constant 0 : index
      %32 = vector.load %arg2[%31, %c0_22] : memref<72x128xf32, #tpu.memory_space<vmem>>, vector<1x128xf32>
      %33 = arith.addf %25, %32 : vector<1x128xf32>
      %c2_i32 = arith.constant 2 : i32
      %c8_i32_23 = arith.constant 8 : i32
      %34 = arith.muli %arg9, %c8_i32_23 : i32
      %35 = arith.addi %1, %34 : i32
      %36 = arith.addi %35, %c2_i32 : i32
      %37 = arith.index_cast %36 : i32 to index
      %38 = memref.load %arg1[%37] : memref<128xi32, #tpu.memory_space<smem>>
      %39 = arith.index_cast %38 : i32 to index
      %c0_24 = arith.constant 0 : index
      %40 = vector.load %arg2[%39, %c0_24] : memref<72x128xf32, #tpu.memory_space<vmem>>, vector<1x128xf32>
      %41 = arith.addf %33, %40 : vector<1x128xf32>
      %c3_i32 = arith.constant 3 : i32
      %c8_i32_25 = arith.constant 8 : i32
      %42 = arith.muli %arg9, %c8_i32_25 : i32
      %43 = arith.addi %1, %42 : i32
      %44 = arith.addi %43, %c3_i32 : i32
      %45 = arith.index_cast %44 : i32 to index
      %46 = memref.load %arg1[%45] : memref<128xi32, #tpu.memory_space<smem>>
      %47 = arith.index_cast %46 : i32 to index
      %c0_26 = arith.constant 0 : index
      %48 = vector.load %arg2[%47, %c0_26] : memref<72x128xf32, #tpu.memory_space<vmem>>, vector<1x128xf32>
      %49 = arith.addf %41, %48 : vector<1x128xf32>
      %c4_i32 = arith.constant 4 : i32
      %c8_i32_27 = arith.constant 8 : i32
      %50 = arith.muli %arg9, %c8_i32_27 : i32
      %51 = arith.addi %1, %50 : i32
      %52 = arith.addi %51, %c4_i32 : i32
      %53 = arith.index_cast %52 : i32 to index
      %54 = memref.load %arg1[%53] : memref<128xi32, #tpu.memory_space<smem>>
      %55 = arith.index_cast %54 : i32 to index
      %c0_28 = arith.constant 0 : index
      %56 = vector.load %arg2[%55, %c0_28] : memref<72x128xf32, #tpu.memory_space<vmem>>, vector<1x128xf32>
      %57 = arith.addf %49, %56 : vector<1x128xf32>
      %c5_i32 = arith.constant 5 : i32
      %c8_i32_29 = arith.constant 8 : i32
      %58 = arith.muli %arg9, %c8_i32_29 : i32
      %59 = arith.addi %1, %58 : i32
      %60 = arith.addi %59, %c5_i32 : i32
      %61 = arith.index_cast %60 : i32 to index
      %62 = memref.load %arg1[%61] : memref<128xi32, #tpu.memory_space<smem>>
      %63 = arith.index_cast %62 : i32 to index
      %c0_30 = arith.constant 0 : index
      %64 = vector.load %arg2[%63, %c0_30] : memref<72x128xf32, #tpu.memory_space<vmem>>, vector<1x128xf32>
      %65 = arith.addf %57, %64 : vector<1x128xf32>
      %c6_i32 = arith.constant 6 : i32
      %c8_i32_31 = arith.constant 8 : i32
      %66 = arith.muli %arg9, %c8_i32_31 : i32
      %67 = arith.addi %1, %66 : i32
      %68 = arith.addi %67, %c6_i32 : i32
      %69 = arith.index_cast %68 : i32 to index
      %70 = memref.load %arg1[%69] : memref<128xi32, #tpu.memory_space<smem>>
      %71 = arith.index_cast %70 : i32 to index
      %c0_32 = arith.constant 0 : index
      %72 = vector.load %arg2[%71, %c0_32] : memref<72x128xf32, #tpu.memory_space<vmem>>, vector<1x128xf32>
      %73 = arith.addf %65, %72 : vector<1x128xf32>
      %c7_i32 = arith.constant 7 : i32
      %c8_i32_33 = arith.constant 8 : i32
      %74 = arith.muli %arg9, %c8_i32_33 : i32
      %75 = arith.addi %1, %74 : i32
      %76 = arith.addi %75, %c7_i32 : i32
      %77 = arith.index_cast %76 : i32 to index
      %78 = memref.load %arg1[%77] : memref<128xi32, #tpu.memory_space<smem>>
      %79 = arith.index_cast %78 : i32 to index
      %c0_34 = arith.constant 0 : index
      %80 = vector.load %arg2[%79, %c0_34] : memref<72x128xf32, #tpu.memory_space<vmem>>, vector<1x128xf32>
      %81 = arith.addf %73, %80 : vector<1x128xf32>
      %c8_i32_35 = arith.constant 8 : i32
      %cst_36 = arith.constant 1.250000e-01 : f32
      %82 = vector.broadcast %cst_36 : f32 to vector<1x128xf32>
      %83 = arith.mulf %81, %82 : vector<1x128xf32>
      %84 = arith.index_cast %arg9 : i32 to index
      %c0_37 = arith.constant 0 : index
      %85 = vector.load %arg8[%84, %c0_37] : memref<8x128xf32, #tpu.memory_space<vmem>>, vector<1x128xf32>
      tpu.vector_store %arg8[%84, %c0_37], %83 {strides = array<i32>} : memref<8x128xf32, #tpu.memory_space<vmem>>, vector<1x128xf32>,
    }
    %c8_i32_2 = arith.constant 8 : i32
    %c0 = arith.constant 0 : index
    %c0_3 = arith.constant 0 : index
    %3 = vector.load %arg8[%c0, %c0_3] : memref<8x128xf32, #tpu.memory_space<vmem>>, vector<8x128xf32>
    %c0_4 = arith.constant 0 : index
    %c0_5 = arith.constant 0 : index
    %4 = vector.load %arg3[%c0_4, %c0_5] : memref<128x128xf32, #tpu.memory_space<vmem>>, vector<128x128xf32>
    %cst = arith.constant dense<0.000000e+00> : vector<8x128xf32>
    %5 = tpu.matmul %3, %4, %cst {dimension_numbers = #tpu.dot_dimension_numbers<[1], [0], [0], [1], [0, 0, 1, 1], [], []>} : vector<8x128xf32>, vector<128x128xf32>, vector<8x128xf32> -> vector<8x128xf32>
    %c0_6 = arith.constant 0 : index
    %c0_7 = arith.constant 0 : index
    %6 = vector.load %arg4[%c0_6, %c0_7] : memref<1x128xf32, #tpu.memory_space<vmem>>, vector<1x128xf32>
    %7 = vector.broadcast %6 : vector<1x128xf32> to vector<8x128xf32>
    %8 = arith.addf %5, %7 : vector<8x128xf32>
    %cst_8 = arith.constant 0.000000e+00 : f32
    %9 = vector.broadcast %cst_8 : f32 to vector<8x128xf32>
    %10 = arith.maximumf %8, %9 : vector<8x128xf32>
    %c0_9 = arith.constant 0 : index
    %c0_10 = arith.constant 0 : index
    %11 = vector.load %arg5[%c0_9, %c0_10] : memref<128x128xf32, #tpu.memory_space<vmem>>, vector<128x128xf32>
    %cst_11 = arith.constant dense<0.000000e+00> : vector<8x128xf32>
    %12 = tpu.matmul %10, %11, %cst_11 {dimension_numbers = #tpu.dot_dimension_numbers<[1], [0], [0], [1], [0, 0, 1, 1], [], []>} : vector<8x128xf32>, vector<128x128xf32>, vector<8x128xf32> -> vector<8x128xf32>
    %c0_12 = arith.constant 0 : index
    %c0_13 = arith.constant 0 : index
    %13 = vector.load %arg6[%c0_12, %c0_13] : memref<1x128xf32, #tpu.memory_space<vmem>>, vector<1x128xf32>
    %14 = vector.broadcast %13 : vector<1x128xf32> to vector<8x128xf32>
    %15 = arith.addf %12, %14 : vector<8x128xf32>
    %c0_14 = arith.constant 0 : index
    %c0_15 = arith.constant 0 : index
    %16 = vector.load %arg7[%c0_14, %c0_15] : memref<8x128xf32, #tpu.memory_space<vmem>>, vector<8x128xf32>
    tpu.vector_store %arg7[%c0_14, %c0_15], %15 {strides = array<i32>} : memref<8x128xf32, #tpu.memory_space<vmem>>, vector<8x128xf32>,
    return
  }
  func.func @transform_0(%arg0: i32, %arg1: memref<128xi32, #tpu.memory_space<smem>>) -> (i32, i32) {
    %c0_i32 = arith.constant 0 : i32
    %c0_i32_0 = arith.constant 0 : i32
    %c0_i32_1 = arith.constant 0 : i32
    return %c0_i32, %c0_i32_0 : i32, i32
  }
  func.func @transform_1(%arg0: i32, %arg1: memref<128xi32, #tpu.memory_space<smem>>) -> (i32, i32) {
    %c0_i32 = arith.constant 0 : i32
    %c0_i32_0 = arith.constant 0 : i32
    %c0_i32_1 = arith.constant 0 : i32
    return %c0_i32, %c0_i32_0 : i32, i32
  }
  func.func @transform_2(%arg0: i32, %arg1: memref<128xi32, #tpu.memory_space<smem>>) -> (i32, i32) {
    %c0_i32 = arith.constant 0 : i32
    %c0_i32_0 = arith.constant 0 : i32
    %c0_i32_1 = arith.constant 0 : i32
    return %c0_i32, %c0_i32_0 : i32, i32
  }
  func.func @transform_3(%arg0: i32, %arg1: memref<128xi32, #tpu.memory_space<smem>>) -> (i32, i32) {
    %c0_i32 = arith.constant 0 : i32
    %c0_i32_0 = arith.constant 0 : i32
    %c0_i32_1 = arith.constant 0 : i32
    return %c0_i32, %c0_i32_0 : i32, i32
  }
  func.func @transform_4(%arg0: i32, %arg1: memref<128xi32, #tpu.memory_space<smem>>) -> (i32, i32) {
    %c0_i32 = arith.constant 0 : i32
    %c0_i32_0 = arith.constant 0 : i32
    %c0_i32_1 = arith.constant 0 : i32
    return %c0_i32, %c0_i32_0 : i32, i32
  }
  func.func @transform_5(%arg0: i32, %arg1: memref<128xi32, #tpu.memory_space<smem>>) -> (i32, i32) {
    %c0_i32 = arith.constant 0 : i32
    %c0_i32_0 = arith.constant 0 : i32
    return %arg0, %c0_i32 : i32, i32
  }
}

</mosaic_0001>

<llo_original>
// kernel: tpu_custom_call.1
$region0: #{tpu_custom_call.1}
  #allocation0 [shape = 'u32[]', space=smem, size = 0x4, offset = 0x4, fixed_abs, tag = 'smem constant byte address 0x4 - core index']
  #allocation1 [shape = 'u32[144,128]{1,0:T(1,128)}', space=vmem, size = 0x12000, scoped, tag = 'internal scratch']
  #allocation2 [shape = 'f32[8,128]{1,0:T(8,128)}', space=vmem, size = 0x1000, scoped, tag = 'scratch operand']
  #allocation3 [shape = 's32[1]{0}', space=sflag, size = 0x4, scoped, tag = 'scoped memory for tpu_custom_call.1']
  #allocation4 [shape = 'u8[512]{0}', space=smem, size = 0x200, scoped, tag = 'prefetched SMEM operand 0']
  %s0 = inlined_call_operand.hbm [shape: s32[128], index: 0, kind: input, shape index: {}]
  %s1 = inlined_call_operand.hbm [shape: f32[72,128], index: 1, kind: input, shape index: {}]
  %s2 = inlined_call_operand.hbm [shape: f32[128,128], index: 2, kind: input, shape index: {}]
  %s3 = inlined_call_operand.vmem [shape: f32[1,128], index: 3, kind: input, shape index: {}]
  %s4 = inlined_call_operand.hbm [shape: f32[128,128], index: 4, kind: input, shape index: {}]
  %s5 = inlined_call_operand.vmem [shape: f32[1,128], index: 5, kind: input, shape index: {}]
  %s6 = inlined_call_operand.hbm [shape: f32[16,128], index: 6, kind: output, shape index: {}]
  %s7 = sld [smem:[#allocation0]]
  $region72: #{tpu_custom_call.1} parent=0
    _
  %s9 = ssub.s32 1, %s7
  %s10 = scalar_select 0, %s9, %s7
  %12 = dma.hbm_to_smem %s0, 16, [#allocation4], [#allocation3]
  %13 = dma.done [#allocation3], 16
  %14 = sfence
  $region1: #{tpu_custom_call.1} parent=0
    #allocation5 [shape = 'u8[36864]{0}', space=vmem, size = 0x9000, scoped, tag = 'input window, operand 1, single buffered']
    #allocation6 [shape = 's32[2]{0}', space=sflag, size = 0x8, scoped, tag = 'scoped memory for tpu_custom_call.1']
    #allocation7 [shape = 's32[2]{0}', space=sflag, size = 0x8, scoped, tag = 'scoped memory for tpu_custom_call.1']
    #allocation8 [shape = 'u8[65536]{0}', space=vmem, size = 0x10000, scoped, tag = 'input window, operand 2, single buffered']
    #allocation9 [shape = 's32[1]{0}', space=sflag, size = 0x4, scoped, tag = 'scoped memory for tpu_custom_call.1']
    #allocation10 [shape = 'u8[65536]{0}', space=vmem, size = 0x10000, scoped, tag = 'input window, operand 4, single buffered']
    #allocation11 [shape = 'u8[8192]{0}', space=vmem, size = 0x2000, scoped, tag = 'output window, operand 0']
    %15 = vsyncpa [#allocation6], 0
    %16 = vsyncpa [#allocation9], 0
    %17 = vsyncpa [#allocation7], 0
    %s18 = scalar_lea.sflag [#allocation7], 1
    %19 = vsyncpa %s18, 0
    loop: start=0, step=1, limit=4
    $region2: #{tpu_custom_call.1} parent=1 // loop_pre_header
      _
    $region3: #{tpu_custom_call.1} parent=1 // loop_header
      %s21 = sphi 0, %s25
      %p22 = scmp.ge.s32.totalorder %s21, 4
      %s29 = sphi 0, %s29
      %s31 = sphi 0, %s29
      %s32 = sphi 0, %s31
      %s46 = sphi 0, %s32
      %s50 = sphi 0, %s50
      %s52 = sphi 0, %s50
      %s53 = sphi 0, %s52
      %s67 = sphi 0, %s53
      %s71 = sphi 0, %s71
      %s73 = sphi 0, %s71
      %s74 = sphi 0, %s73
      %s88 = sphi 0, %s74
      %s92 = sphi 0, %s92
      %s94 = sphi 0, %s92
      %s95 = sphi 0, %s94
      %s109 = sphi 0, %s95
      %s113 = sphi 0, %s113
      %s115 = sphi 0, %s113
      %s116 = sphi 0, %s115
      %s130 = sphi 0, %s116
      %s136 = sphi 0, %s138
      %s139 = sphi 0, %s136
      %s140 = sphi 0, %s139
      %s156 = sphi 0, %s140
    $region4: #{tpu_custom_call.1} parent=1 // loop_header_branch
      %24 = sbr.rel (%p22) target = $region8
    $region5: #{tpu_custom_call.1} parent=1 // loop_body
      %s26 = ssub.s32 %s21, 1
      %s27 = ssub.s32 %s21, 2
      %s28 = sadd.s32 %s21, 1
      %s30 = sadd.s32 %s29, 1
      %p33 = scmp.eq.s32.totalorder %s21, 1
      %p34 = scmp.ne.s32.totalorder %s29, %s31
      %p35 = scmp.eq.s32.totalorder %s21, 0
      %p36 = por %p34, %p35
      %p37 = scmp.ne.s32.totalorder %s29, %s31
      %p38 = scmp.eq.s32.totalorder %s26, 1
      %p39 = por %p37, %p38
      %p40 = scmp.ne.s32.totalorder %s31, %s32
      %p41 = scmp.eq.s32.totalorder %s26, 0
      %p42 = por %p40, %p41
      %p43 = scmp.ne.s32.totalorder %s31, %s32
      %p44 = scmp.eq.s32.totalorder %s27, 1
      %p45 = por %p43, %p44
      %p47 = scmp.ne.s32.totalorder %s32, %s46
      %p48 = scmp.eq.s32.totalorder %s27, 0
      %p49 = por %p47, %p48
      %s51 = sadd.s32 %s50, 1
      %p54 = scmp.eq.s32.totalorder %s21, 1
      %p55 = scmp.ne.s32.totalorder %s50, %s52
      %p56 = scmp.eq.s32.totalorder %s21, 0
      %p57 = por %p55, %p56
      %p58 = scmp.ne.s32.totalorder %s50, %s52
      %p59 = scmp.eq.s32.totalorder %s26, 1
      %p60 = por %p58, %p59
      %p61 = scmp.ne.s32.totalorder %s52, %s53
      %p62 = scmp.eq.s32.totalorder %s26, 0
      %p63 = por %p61, %p62
      %p64 = scmp.ne.s32.totalorder %s52, %s53
      %p65 = scmp.eq.s32.totalorder %s27, 1
      %p66 = por %p64, %p65
      %p68 = scmp.ne.s32.totalorder %s53, %s67
      %p69 = scmp.eq.s32.totalorder %s27, 0
      %p70 = por %p68, %p69
      %s72 = sadd.s32 %s71, 1
      %p75 = scmp.eq.s32.totalorder %s21, 1
      %p76 = scmp.ne.s32.totalorder %s71, %s73
      %p77 = scmp.eq.s32.totalorder %s21, 0
      %p78 = por %p76, %p77
      %p79 = scmp.ne.s32.totalorder %s71, %s73
      %p80 = scmp.eq.s32.totalorder %s26, 1
      %p81 = por %p79, %p80
      %p82 = scmp.ne.s32.totalorder %s73, %s74
      %p83 = scmp.eq.s32.totalorder %s26, 0
      %p84 = por %p82, %p83
      %p85 = scmp.ne.s32.totalorder %s73, %s74
      %p86 = scmp.eq.s32.totalorder %s27, 1
      %p87 = por %p85, %p86
      %p89 = scmp.ne.s32.totalorder %s74, %s88
      %p90 = scmp.eq.s32.totalorder %s27, 0
      %p91 = por %p89, %p90
      %s93 = sadd.s32 %s92, 1
      %p96 = scmp.eq.s32.totalorder %s21, 1
      %p97 = scmp.ne.s32.totalorder %s92, %s94
      %p98 = scmp.eq.s32.totalorder %s21, 0
      %p99 = por %p97, %p98
      %p100 = scmp.ne.s32.totalorder %s92, %s94
      %p101 = scmp.eq.s32.totalorder %s26, 1
      %p102 = por %p100, %p101
      %p103 = scmp.ne.s32.totalorder %s94, %s95
      %p104 = scmp.eq.s32.totalorder %s26, 0
      %p105 = por %p103, %p104
      %p106 = scmp.ne.s32.totalorder %s94, %s95
      %p107 = scmp.eq.s32.totalorder %s27, 1
      %p108 = por %p106, %p107
      %p110 = scmp.ne.s32.totalorder %s95, %s109
      %p111 = scmp.eq.s32.totalorder %s27, 0
      %p112 = por %p110, %p111
      %s114 = sadd.s32 %s113, 1
      %p117 = scmp.eq.s32.totalorder %s21, 1
      %p118 = scmp.ne.s32.totalorder %s113, %s115
      %p119 = scmp.eq.s32.totalorder %s21, 0
      %p120 = por %p118, %p119
      %p121 = scmp.ne.s32.totalorder %s113, %s115
      %p122 = scmp.eq.s32.totalorder %s26, 1
      %p123 = por %p121, %p122
      %p124 = scmp.ne.s32.totalorder %s115, %s116
      %p125 = scmp.eq.s32.totalorder %s26, 0
      %p126 = por %p124, %p125
      %p127 = scmp.ne.s32.totalorder %s115, %s116
      %p128 = scmp.eq.s32.totalorder %s27, 1
      %p129 = por %p127, %p128
      %p131 = scmp.ne.s32.totalorder %s116, %s130
      %p132 = scmp.eq.s32.totalorder %s27, 0
      %p133 = por %p131, %p132
      %s134 = ssub.s32 %s21, %s28
      %p135 = scmp.eq.s32.totalorder %s134, 0
      %s137 = sadd.s32 %s136, 1
      %s138 = scalar_select %p135, %s136, %s137
      %p141 = pneg %p135
      %p142 = scmp.eq.s32.totalorder %s21, 1
      %p143 = por %p141, %p142
      %p144 = scmp.ne.s32.totalorder %s136, %s139
      %p145 = scmp.eq.s32.totalorder %s21, 0
      %p146 = por %p144, %p145
      %p147 = scmp.ne.s32.totalorder %s136, %s139
      %p148 = scmp.eq.s32.totalorder %s26, 1
      %p149 = por %p147, %p148
      %p150 = scmp.ne.s32.totalorder %s139, %s140
      %p151 = scmp.eq.s32.totalorder %s26, 0
      %p152 = por %p150, %p151
      %p153 = scmp.ne.s32.totalorder %s139, %s140
      %p154 = scmp.eq.s32.totalorder %s27, 1
      %p155 = por %p153, %p154
      %p157 = scmp.ne.s32.totalorder %s140, %s156
      %p158 = scmp.eq.s32.totalorder %s27, 0
      %p159 = por %p157, %p158
      %p160 = scmp.le.s32.totalorder 1, %s21
      %p161 = scmp.lt.s32.totalorder %s21, 3
      %p162 = pnand %p160, %p161
      %p163 = pneg %p162
      // Predicated region
      $region9: #{tpu_custom_call.1} parent=5 // pred_check
        _
      $region10: #{tpu_custom_call.1} parent=5 // pred_check_branch
        %165 = sbr.rel (%p162) target = $region12
      $region11: #{tpu_custom_call.1} parent=5 // pred_region
        %s166 = ssub.s32 %s21, 1
        // Predicated region
        $region13: #{tpu_custom_call.1} parent=11 // pred_check
          %p167 = pneg %p42
        $region14: #{tpu_custom_call.1} parent=11 // pred_check_branch
          %169 = sbr.rel (%p167) target = $region16
        $region15: #{tpu_custom_call.1} parent=11 // pred_region
          %s171 = ssub.s32 1152, 1152
          %172 = vsyncadd [#allocation6], %s171
          %s173 = sshll.u32 [#allocation5], 4
          %s174 = int_to_ptr.vmem [resolvable:$true] %s173
          %179 = dma.hbm_to_vmem [thread:$0]  %s1, 1152, %s174, [#allocation6], 128, 128, 8
        $region16: #{tpu_custom_call.1} parent=11 // pred_fallthru
          _
        // Predicated region
        $region17: #{tpu_custom_call.1} parent=11 // pred_check
          %p180 = pneg %p63
        $region18: #{tpu_custom_call.1} parent=11 // pred_check_branch
          %182 = sbr.rel (%p180) target = $region20
        $region19: #{tpu_custom_call.1} parent=11 // pred_region
          %s184 = ssub.s32 2048, 2048
          %185 = vsyncadd [#allocation9], %s184
          %s186 = sshll.u32 [#allocation8], 4
          %s187 = int_to_ptr.vmem [resolvable:$true] %s186
          %192 = dma.hbm_to_vmem [thread:$0]  %s2, 2048, %s187, [#allocation9], 128, 128, 8
        $region20: #{tpu_custom_call.1} parent=11 // pred_fallthru
          _
        // Predicated region
        $region21: #{tpu_custom_call.1} parent=11 // pred_check
          %p193 = pneg %p84
        $region22: #{tpu_custom_call.1} parent=11 // pred_check_branch
          %195 = sbr.rel (%p193) target = $region24
        $region23: #{tpu_custom_call.1} parent=11 // pred_region
          _
        $region24: #{tpu_custom_call.1} parent=11 // pred_fallthru
          _
        // Predicated region
        $region25: #{tpu_custom_call.1} parent=11 // pred_check
          %p196 = pneg %p105
        $region26: #{tpu_custom_call.1} parent=11 // pred_check_branch
          %198 = sbr.rel (%p196) target = $region28
        $region27: #{tpu_custom_call.1} parent=11 // pred_region
          %s200 = ssub.s32 2048, 2048
          %201 = vsyncadd [#allocation9], %s200
          %s202 = sshll.u32 [#allocation10], 4
          %s203 = int_to_ptr.vmem [resolvable:$true] %s202
          %208 = dma.hbm_to_vmem [thread:$0]  %s4, 2048, %s203, [#allocation9], 128, 128, 8
        $region28: #{tpu_custom_call.1} parent=11 // pred_fallthru
          _
        // Predicated region
        $region29: #{tpu_custom_call.1} parent=11 // pred_check
          %p209 = pneg %p126
        $region30: #{tpu_custom_call.1} parent=11 // pred_check_branch
          %211 = sbr.rel (%p209) target = $region32
        $region31: #{tpu_custom_call.1} parent=11 // pred_region
          _
        $region32: #{tpu_custom_call.1} parent=11 // pred_fallthru
          _
      $region12: #{tpu_custom_call.1} parent=5 // pred_fallthru
        _
      %p212 = scmp.lt.s32.totalorder %s21, 2
      // Predicated region
      $region33: #{tpu_custom_call.1} parent=5 // pred_check
        %p213 = pneg %p212
      $region34: #{tpu_custom_call.1} parent=5 // pred_check_branch
        %215 = sbr.rel (%p213) target = $region36
      $region35: #{tpu_custom_call.1} parent=5 // pred_region
        _
      $region36: #{tpu_custom_call.1} parent=5 // pred_fallthru
        _
      %p216 = scmp.le.s32.totalorder 1, %s21
      %p217 = scmp.lt.s32.totalorder %s21, 3
      %p218 = pnand %p216, %p217
      %p219 = pneg %p218
      // Predicated region
      $region37: #{tpu_custom_call.1} parent=5 // pred_check
        _
      $region38: #{tpu_custom_call.1} parent=5 // pred_check_branch
        %221 = sbr.rel (%p218) target = $region40
      $region39: #{tpu_custom_call.1} parent=5 // pred_region
        %s222 = ssub.s32 %s21, 1
        // Predicated region
        $region41: #{tpu_custom_call.1} parent=39 // pred_check
          %p223 = pneg %p42
        $region42: #{tpu_custom_call.1} parent=39 // pred_check_branch
          %225 = sbr.rel (%p223) target = $region44
        $region43: #{tpu_custom_call.1} parent=39 // pred_region
          %226 = dma.done [#allocation6], 1152
        $region44: #{tpu_custom_call.1} parent=39 // pred_fallthru
          _
        // Predicated region
        $region45: #{tpu_custom_call.1} parent=39 // pred_check
          %p227 = pneg %p63
        $region46: #{tpu_custom_call.1} parent=39 // pred_check_branch
          %229 = sbr.rel (%p227) target = $region48
        $region47: #{tpu_custom_call.1} parent=39 // pred_region
          %230 = dma.done [#allocation9], 2048
        $region48: #{tpu_custom_call.1} parent=39 // pred_fallthru
          _
        // Predicated region
        $region49: #{tpu_custom_call.1} parent=39 // pred_check
          %p231 = pneg %p105
        $region50: #{tpu_custom_call.1} parent=39 // pred_check_branch
          %233 = sbr.rel (%p231) target = $region52
        $region51: #{tpu_custom_call.1} parent=39 // pred_region
          %234 = dma.done [#allocation9], 2048
        $region52: #{tpu_custom_call.1} parent=39 // pred_fallthru
          _
        %p235 = pneg %p42
        %p236 = pneg %p39
        %p237 = pneg %p63
        %p238 = pneg %p60
        %p239 = pneg %p84
        %p240 = pneg %p81
        %p241 = pneg %p105
        %p242 = pneg %p102
        %p243 = pneg %p126
        %p244 = pneg %p123
        %p245 = pneg %p152
        %p246 = pneg %p149
        %s247 = sand.u32 %s139, 1
        %s248 = scalar_lea.sflag [#allocation7], %s247
        %s249 = sand.u32 %s139, 1
        %s250 = smul.addr %s249, 8
        %s251 = scalar_lea.vmem [#allocation11], %s250
        %s252 = smul.u32 %s26, 64
        loop: start=0, step=1, limit=8
        $region53: #{tpu_custom_call.1} parent=39 // loop_pre_header
          _
        $region54: #{tpu_custom_call.1} parent=39 // loop_header
          %s254 = sphi 0, %s258
          %p255 = scmp.ge.s32.totalorder %s254, 8
        $region55: #{tpu_custom_call.1} parent=39 // loop_header_branch
          %257 = sbr.rel (%p255) target = $region59
        $region56: #{tpu_custom_call.1} parent=39 // loop_body
          %s259 = smul.u32 %s254, 8
          %s260 = sadd.s32 %s252, %s259
          %s261 = sld [smem:[#allocation4 + %s260]]
          %s262 = scalar_lea.vmem [#allocation5], %s261
          %v263 = vld [vmem:[%s262] sm:$0x1]
          %v264 = vadd.f32 %v263, 0.0
          %s265 = sadd.s32 %s260, 1
          %s266 = sld [smem:[#allocation4 + %s265]]
          %s267 = scalar_lea.vmem [#allocation5], %s266
          %v268 = vld [vmem:[%s267] sm:$0x1]
          %v269 = vadd.f32 %v264, %v268
          %s270 = sadd.s32 %s260, 2
          %s271 = sld [smem:[#allocation4 + %s270]]
          %s272 = scalar_lea.vmem [#allocation5], %s271
          %v273 = vld [vmem:[%s272] sm:$0x1]
          %v274 = vadd.f32 %v269, %v273
          %s275 = sadd.s32 %s260, 3
          %s276 = sld [smem:[#allocation4 + %s275]]
          %s277 = scalar_lea.vmem [#allocation5], %s276
          %v278 = vld [vmem:[%s277] sm:$0x1]
          %v279 = vadd.f32 %v274, %v278
          %s280 = sadd.s32 %s260, 4
          %s281 = sld [smem:[#allocation4 + %s280]]
          %s282 = scalar_lea.vmem [#allocation5], %s281
          %v283 = vld [vmem:[%s282] sm:$0x1]
          %v284 = vadd.f32 %v279, %v283
          %s285 = sadd.s32 %s260, 5
          %s286 = sld [smem:[#allocation4 + %s285]]
          %s287 = scalar_lea.vmem [#allocation5], %s286
          %v288 = vld [vmem:[%s287] sm:$0x1]
          %v289 = vadd.f32 %v284, %v288
          %s290 = sadd.s32 %s260, 6
          %s291 = sld [smem:[#allocation4 + %s290]]
          %s292 = scalar_lea.vmem [#allocation5], %s291
          %v293 = vld [vmem:[%s292] sm:$0x1]
          %v294 = vadd.f32 %v289, %v293
          %s295 = sadd.s32 %s260, 7
          %s296 = sld [smem:[#allocation4 + %s295]]
          %s297 = scalar_lea.vmem [#allocation5], %s296
          %v298 = vld [vmem:[%s297] sm:$0x1]
          %v299 = vadd.f32 %v294, %v298
          %v300 = vmul.f32 %v299, 0.125
          %s301 = scalar_lea.vmem [#allocation2], %s254
          %302 = vst [vmem:[%s301] sm:$0x1] %v300
        $region57: #{tpu_custom_call.1} parent=39 // loop_footer
          %s258 = sadd.s32 1, %s254
        $region58: #{tpu_custom_call.1} parent=39 // loop_footer_branch
          %253 = sbr.rel target = $region54
        $region59: #{tpu_custom_call.1} parent=39 // loop_exit
          _
        %v303 = vld [vmem:[#allocation2] sm:$0xff]
        %v304 = vld [vmem:[#allocation8] sm:$0xff]
        %v305 = vld [vmem:[#allocation8 + $0x8] sm:$0xff]
        %v306 = vld [vmem:[#allocation8 + $0x10] sm:$0xff]
        %v307 = vld [vmem:[#allocation8 + $0x18] sm:$0xff]
        %v308 = vld [vmem:[#allocation8 + $0x20] sm:$0xff]
        %v309 = vld [vmem:[#allocation8 + $0x28] sm:$0xff]
        %v310 = vld [vmem:[#allocation8 + $0x30] sm:$0xff]
        %v311 = vld [vmem:[#allocation8 + $0x38] sm:$0xff]
        %v312 = vld [vmem:[#allocation8 + $0x40] sm:$0xff]
        %v313 = vld [vmem:[#allocation8 + $0x48] sm:$0xff]
        %v314 = vld [vmem:[#allocation8 + $0x50] sm:$0xff]
        %v315 = vld [vmem:[#allocation8 + $0x58] sm:$0xff]
        %v316 = vld [vmem:[#allocation8 + $0x60] sm:$0xff]
        %v317 = vld [vmem:[#allocation8 + $0x68] sm:$0xff]
        %v318 = vld [vmem:[#allocation8 + $0x70] sm:$0xff]
        %v319 = vld [vmem:[#allocation8 + $0x78] sm:$0xff]
        %v320 = vld [vmem:[%s3] sm:$0x1]
        %v322 = vlaneseq
        %v323 = vshrl.u32 %v322, 7
        %v324 = vsub.s32 0, %v323
        %v325 = vrot.slane %v320, %v324
        %327 = vmatprep.subr.mxu0 0.0
        %328 = vmatpush1.msra.mxu0 %v319
        %329 = vmatprep.subr.mxu0 0.0
        %330 = vmatpush1.msra.mxu0 %v318
        %331 = vmatprep.subr.mxu0 0.0
        %332 = vmatpush1.msra.mxu0 %v317
        %333 = vmatprep.subr.mxu0 0.0
        %334 = vmatpush1.msra.mxu0 %v316
        %335 = vmatprep.subr.mxu0 0.0
        %336 = vmatpush1.msra.mxu0 %v315
        %337 = vmatprep.subr.mxu0 0.0
        %338 = vmatpush1.msra.mxu0 %v314
        %339 = vmatprep.subr.mxu0 0.0
        %340 = vmatpush1.msra.mxu0 %v313
        %341 = vmatprep.subr.mxu0 0.0
        %342 = vmatpush1.msra.mxu0 %v312
        %343 = vmatprep.subr.mxu0 0.0
        %344 = vmatpush1.msra.mxu0 %v311
        %345 = vmatprep.subr.mxu0 0.0
        %346 = vmatpush1.msra.mxu0 %v310
        %347 = vmatprep.subr.mxu0 0.0
        %348 = vmatpush1.msra.mxu0 %v309
        %349 = vmatprep.subr.mxu0 0.0
        %350 = vmatpush1.msra.mxu0 %v308
        %351 = vmatprep.subr.mxu0 0.0
        %352 = vmatpush1.msra.mxu0 %v307
        %353 = vmatprep.subr.mxu0 0.0
        %354 = vmatpush1.msra.mxu0 %v306
        %355 = vmatprep.subr.mxu0 0.0
        %356 = vmatpush1.msra.mxu0 %v305
        %357 = vmatprep.subr.mxu0 0.0
        %358 = vmatpush1.msra.mxu0 %v304
        %359 = vmatprep.subr.mxu0 0.0
        %360 = vmatpush2.msra.mxu0 0.0
        %361 = vmatprep.subr.mxu0 0.0
        %362 = vmatpush2.msra.mxu0 0.0
        %363 = vmatprep.subr.mxu0 0.0
        %364 = vmatpush2.msra.mxu0 0.0
        %365 = vmatprep.subr.mxu0 0.0
        %366 = vmatpush2.msra.mxu0 0.0
        %367 = vmatprep.subr.mxu0 0.0
        %368 = vmatpush2.msra.mxu0 0.0
        %369 = vmatprep.subr.mxu0 0.0
        %370 = vmatpush2.msra.mxu0 0.0
        %371 = vmatprep.subr.mxu0 0.0
        %372 = vmatpush2.msra.mxu0 0.0
        %373 = vmatprep.subr.mxu0 0.0
        %374 = vmatpush2.msra.mxu0 0.0
        %375 = vmatprep.subr.mxu0 0.0
        %376 = vmatpush2.msra.mxu0 0.0
        %377 = vmatprep.subr.mxu0 0.0
        %378 = vmatpush2.msra.mxu0 0.0
        %379 = vmatprep.subr.mxu0 0.0
        %380 = vmatpush2.msra.mxu0 0.0
        %381 = vmatprep.subr.mxu0 0.0
        %382 = vmatpush2.msra.mxu0 0.0
        %383 = vmatprep.subr.mxu0 0.0
        %384 = vmatpush2.msra.mxu0 0.0
        %385 = vmatprep.subr.mxu0 0.0
        %386 = vmatpush2.msra.mxu0 0.0
        %387 = vmatprep.subr.mxu0 0.0
        %388 = vmatpush2.msra.mxu0 0.0
        %389 = vmatprep.subr.mxu0 0.0
        %390 = vmatpush2.msra.mxu0 0.0
        %391 = vmatprep.mubr.f32.mxu0 0.0
        %392 = vmatmul.mubr.f32.gmra.mxu0 %v303
        %v393 = vpop.f32.mrf.mxu0
        %v394 = vadd.f32 %v325, %v393
        %v395 = vpop.f32.mrf.mxu0
        %396 = vdwg.mxu0
        %v397 = vmax.f32 %v394, 0.0
        %v398 = vld [vmem:[#allocation10] sm:$0xff]
        %v399 = vld [vmem:[#allocation10 + $0x8] sm:$0xff]
        %v400 = vld [vmem:[#allocation10 + $0x10] sm:$0xff]
        %v401 = vld [vmem:[#allocation10 + $0x18] sm:$0xff]
        %v402 = vld [vmem:[#allocation10 + $0x20] sm:$0xff]
        %v403 = vld [vmem:[#allocation10 + $0x28] sm:$0xff]
        %v404 = vld [vmem:[#allocation10 + $0x30] sm:$0xff]
        %v405 = vld [vmem:[#allocation10 + $0x38] sm:$0xff]
        %v406 = vld [vmem:[#allocation10 + $0x40] sm:$0xff]
        %v407 = vld [vmem:[#allocation10 + $0x48] sm:$0xff]
        %v408 = vld [vmem:[#allocation10 + $0x50] sm:$0xff]
        %v409 = vld [vmem:[#allocation10 + $0x58] sm:$0xff]
        %v410 = vld [vmem:[#allocation10 + $0x60] sm:$0xff]
        %v411 = vld [vmem:[#allocation10 + $0x68] sm:$0xff]
        %v412 = vld [vmem:[#allocation10 + $0x70] sm:$0xff]
        %v413 = vld [vmem:[#allocation10 + $0x78] sm:$0xff]
        %v414 = vld [vmem:[%s5] sm:$0x1]
        %v416 = vlaneseq
        %v417 = vshrl.u32 %v416, 7
        %v418 = vsub.s32 0, %v417
        %v419 = vrot.slane %v414, %v418
        %421 = vmatprep.subr.mxu0 0.0
        %422 = vmatpush1.msra.mxu0 %v413
        %423 = vmatprep.subr.mxu0 0.0
        %424 = vmatpush1.msra.mxu0 %v412
        %425 = vmatprep.subr.mxu0 0.0
        %426 = vmatpush1.msra.mxu0 %v411
        %427 = vmatprep.subr.mxu0 0.0
        %428 = vmatpush1.msra.mxu0 %v410
        %429 = vmatprep.subr.mxu0 0.0
        %430 = vmatpush1.msra.mxu0 %v409
        %431 = vmatprep.subr.mxu0 0.0
        %432 = vmatpush1.msra.mxu0 %v408
        %433 = vmatprep.subr.mxu0 0.0
        %434 = vmatpush1.msra.mxu0 %v407
        %435 = vmatprep.subr.mxu0 0.0
        %436 = vmatpush1.msra.mxu0 %v406
        %437 = vmatprep.subr.mxu0 0.0
        %438 = vmatpush1.msra.mxu0 %v405
        %439 = vmatprep.subr.mxu0 0.0
        %440 = vmatpush1.msra.mxu0 %v404
        %441 = vmatprep.subr.mxu0 0.0
        %442 = vmatpush1.msra.mxu0 %v403
        %443 = vmatprep.subr.mxu0 0.0
        %444 = vmatpush1.msra.mxu0 %v402
        %445 = vmatprep.subr.mxu0 0.0
        %446 = vmatpush1.msra.mxu0 %v401
        %447 = vmatprep.subr.mxu0 0.0
        %448 = vmatpush1.msra.mxu0 %v400
        %449 = vmatprep.subr.mxu0 0.0
        %450 = vmatpush1.msra.mxu0 %v399
        %451 = vmatprep.subr.mxu0 0.0
        %452 = vmatpush1.msra.mxu0 %v398
        %453 = vmatprep.subr.mxu0 0.0
        %454 = vmatpush2.msra.mxu0 0.0
        %455 = vmatprep.subr.mxu0 0.0
        %456 = vmatpush2.msra.mxu0 0.0
        %457 = vmatprep.subr.mxu0 0.0
        %458 = vmatpush2.msra.mxu0 0.0
        %459 = vmatprep.subr.mxu0 0.0
        %460 = vmatpush2.msra.mxu0 0.0
        %461 = vmatprep.subr.mxu0 0.0
        %462 = vmatpush2.msra.mxu0 0.0
        %463 = vmatprep.subr.mxu0 0.0
        %464 = vmatpush2.msra.mxu0 0.0
        %465 = vmatprep.subr.mxu0 0.0
        %466 = vmatpush2.msra.mxu0 0.0
        %467 = vmatprep.subr.mxu0 0.0
        %468 = vmatpush2.msra.mxu0 0.0
        %469 = vmatprep.subr.mxu0 0.0
        %470 = vmatpush2.msra.mxu0 0.0
        %471 = vmatprep.subr.mxu0 0.0
        %472 = vmatpush2.msra.mxu0 0.0
        %473 = vmatprep.subr.mxu0 0.0
        %474 = vmatpush2.msra.mxu0 0.0
        %475 = vmatprep.subr.mxu0 0.0
        %476 = vmatpush2.msra.mxu0 0.0
        %477 = vmatprep.subr.mxu0 0.0
        %478 = vmatpush2.msra.mxu0 0.0
        %479 = vmatprep.subr.mxu0 0.0
        %480 = vmatpush2.msra.mxu0 0.0
        %481 = vmatprep.subr.mxu0 0.0
        %482 = vmatpush2.msra.mxu0 0.0
        %483 = vmatprep.subr.mxu0 0.0
        %484 = vmatpush2.msra.mxu0 0.0
        %485 = vmatprep.mubr.f32.mxu0 0.0
        %486 = vmatmul.mubr.f32.gmra.mxu0 %v397
        %v487 = vpop.f32.mrf.mxu0
        %v488 = vadd.f32 %v419, %v487
        %v489 = vpop.f32.mrf.mxu0
        %490 = vdwg.mxu0
        %491 = vst [vmem:[%s251] sm:$0xff] %v488
        %s492 = sand.u32 %s139, 1
        %s493 = scalar_lea.sflag [#allocation7], %s492
        %s494 = sand.u32 %s139, 1
        %s495 = smul.addr %s494, 8
        %s496 = scalar_lea.vmem [#allocation11], %s495
        // Predicated region
        $region60: #{tpu_custom_call.1} parent=39 // pred_check
          %p497 = pneg %p149
        $region61: #{tpu_custom_call.1} parent=39 // pred_check_branch
          %499 = sbr.rel (%p497) target = $region63
        $region62: #{tpu_custom_call.1} parent=39 // pred_region
          %s501 = ssub.s32 128, 128
          %502 = vsyncadd %s493, %s501
          %s503 = smul.addr %s26, 128
          %s504 = scalar_lea.hbm %s6, %s503
          %s506 = sshll.u32 %s496, 4
          %s507 = int_to_ptr.vmem [resolvable:$true] %s506
          %509 = dma.vmem_to_hbm [thread:$0]  %s507, 128, %s504, %s493
        $region63: #{tpu_custom_call.1} parent=39 // pred_fallthru
          _
      $region40: #{tpu_custom_call.1} parent=5 // pred_fallthru
        _
      %p510 = scmp.le.s32.totalorder 2, %s21
      // Predicated region
      $region64: #{tpu_custom_call.1} parent=5 // pred_check
        %p511 = pneg %p510
      $region65: #{tpu_custom_call.1} parent=5 // pred_check_branch
        %513 = sbr.rel (%p511) target = $region67
      $region66: #{tpu_custom_call.1} parent=5 // pred_region
        %s514 = ssub.s32 %s21, 2
        // Predicated region
        $region68: #{tpu_custom_call.1} parent=66 // pred_check
          %p515 = pneg %p155
        $region69: #{tpu_custom_call.1} parent=66 // pred_check_branch
          %517 = sbr.rel (%p515) target = $region71
        $region70: #{tpu_custom_call.1} parent=66 // pred_region
          %s518 = sand.u32 %s140, 1
          %s519 = scalar_lea.sflag [#allocation7], %s518
          %s520 = sand.u32 %s140, 1
          %s521 = smul.addr %s520, 8
          %s522 = scalar_lea.vmem [#allocation11], %s521
          %523 = dma.done %s519, 128
        $region71: #{tpu_custom_call.1} parent=66 // pred_fallthru
          _
      $region67: #{tpu_custom_call.1} parent=5 // pred_fallthru
        _
    $region6: #{tpu_custom_call.1} parent=1 // loop_footer
      %s25 = sadd.s32 1, %s21
    $region7: #{tpu_custom_call.1} parent=1 // loop_footer_branch
      %20 = sbr.rel target = $region3
    $region8: #{tpu_custom_call.1} parent=1 // loop_exit
      _
    %524 = vsyncpa [#allocation6], 1
    %s525 = scalar_lea.sflag [#allocation6], 1
    %526 = vsyncpa %s525, 1
    %527 = vsyncpa [#allocation9], 1
    %528 = vsyncpa [#allocation7], 1
    %s529 = scalar_lea.sflag [#allocation7], 1
    %530 = vsyncpa %s529, 1

</llo_original>
